<compile_context>
chip_gen: v6e
topology: v6e:2x2x1
jax: 0.10.0
libtpu: 0.0.40
codegen_flags: <defaults>
</compile_context>

<pallas_src>
import functools

import jax
import jax.numpy as jnp
from jax.experimental import pallas as pl
from jax.experimental.pallas import tpu as pltpu

IN_FEATURES = 300
HIDDEN = 32


def _round_up(n: int, m: int) -> int:
    return ((n + m - 1) // m) * m


def mlp_kernel(x_ref, w1_ref, b1_ref, w2_ref, b2_ref, o_ref):
    # x_ref : (TB, K)   VMEM   (pipelined over the batch grid)
    # w1_ref: (K, H)    VMEM   (resident: constant index_map)
    # b1_ref: (1, H)    VMEM   (resident)
    # w2_ref: (1, H)    VMEM   (resident, row layout of W2)
    # b2_ref: (1, 1)    SMEM   (scalar)
    # o_ref : (1, 1, TB) VMEM  (lane-dense: batch on lanes)
    x = x_ref[...]                                                # (TB, K)
    h = jnp.dot(x, w1_ref[...], preferred_element_type=jnp.float32)
    h = jnp.maximum(h + b1_ref[...], 0.0)                         # ReLU, (TB, H)

    # Layer 2 as (1,H) contracted with (TB,H) on H -> (1, TB): the result is
    # already lane-dense over the batch, so the output store fills full
    # 128-lane vregs (no [TB,1] masked column stores, no transpose of h).
    y = jax.lax.dot_general(
        w2_ref[...], h,
        dimension_numbers=(((1,), (1,)), ((), ())),
        preferred_element_type=jnp.float32)                       # (1, TB)
    y = y + b2_ref[0, 0]

    o_ref[0] = jax.nn.sigmoid(y)                                  # (1, TB)


def neural_network_forward(x, w1, b1, w2, b2, *, block_b: int = 2048):
    """Pallas equivalent of NeuralNetwork.forward.

    x : [B, 300] float32
    w1: [300, H], b1: [1, H]
    w2: [H, 1],   b2: [1, 1]
    returns [B, 1] float32
    """
    B, K = x.shape
    H = w1.shape[1]

    # Batch tile: multiple of 8 (f32 sublane), capped so double-buffered input
    # blocks stay far under the scoped-VMEM default on all generations
    # (2048 x 300 x 4 B ~= 2.4 MiB per buffer).
    TB = min(block_b, _round_up(B, 8))
    B_pad = _round_up(B, TB)
    if B_pad != B:
        x = jnp.pad(x, ((0, B_pad - B), (0, 0)))
    G = B_pad // TB

    w2_row = w2.reshape(1, H)     # row layout for the trans-B contraction
    b2_s = b2.reshape(1, 1)

    cost = pl.CostEstimate(
        flops=2 * B_pad * K * H + 2 * B_pad * H,
        transcendentals=B_pad,                       # sigmoid
        bytes_accessed=4 * (B_pad * K + K * H + 2 * H + 1 + B_pad),
    )

    out = pl.pallas_call(
        mlp_kernel,
        out_shape=jax.ShapeDtypeStruct((G, 1, TB), jnp.float32),
        grid=(G,),
        in_specs=[
            pl.BlockSpec((TB, K), lambda i: (i, 0)),          # x: batch-tiled
            pl.BlockSpec((K, H), lambda i: (0, 0)),           # W1: VMEM-resident
            pl.BlockSpec((1, H), lambda i: (0, 0)),           # b1: VMEM-resident
            pl.BlockSpec((1, H), lambda i: (0, 0)),           # W2 row: resident
            pl.BlockSpec(memory_space=pltpu.MemorySpace.SMEM),  # b2 scalar
        ],
        out_specs=pl.BlockSpec((1, 1, TB), lambda i: (i, 0, 0)),
        compiler_params=pltpu.CompilerParams(
            dimension_semantics=("parallel",)),
        cost_estimate=cost,
    )(x, w1, b1, w2_row, b2_s)

    return out.reshape(B_pad, 1)[:B]


def init_params(key, hidden_size):
    # Match torch.nn.Linear default init: U(-1/sqrt(fan_in), 1/sqrt(fan_in)).
    k1, k2, k3, k4 = jax.random.split(key, 4)
    bound1 = 1.0 / jnp.sqrt(jnp.float32(IN_FEATURES))
    bound2 = 1.0 / jnp.sqrt(jnp.float32(hidden_size))
    w1 = jax.random.uniform(k1, (IN_FEATURES, hidden_size), jnp.float32,
                            -bound1, bound1)
    b1 = jax.random.uniform(k2, (1, hidden_size), jnp.float32, -bound1, bound1)
    w2 = jax.random.uniform(k3, (hidden_size, 1), jnp.float32, -bound2, bound2)
    b2 = jax.random.uniform(k4, (1, 1), jnp.float32, -bound2, bound2)
    return w1, b1, w2, b2


if __name__ == "__main__":
    key = jax.random.PRNGKey(0)
    k_x, k_p = jax.random.split(key)

    # Small demo shapes; B deliberately not a multiple of the tile to exercise
    # the padded-tail path, and block_b small enough to get a multi-step grid.
    B = 200
    x = jax.random.normal(k_x, (B, IN_FEATURES), jnp.float32)
    w1, b1, w2, b2 = init_params(k_p, HIDDEN)

    fwd = functools.partial(neural_network_forward, block_b=64)   # grid of 4 tiles
    out = jax.block_until_ready(fwd(x, w1, b1, w2, b2))

    # Reference check in plain JAX (same math as the PyTorch module).
    ref = jax.nn.sigmoid(jnp.maximum(x @ w1 + b1, 0.0) @ w2 + b2)
    assert out.shape == (B, 1)
    max_err = float(jnp.max(jnp.abs(out - ref)))
    assert jnp.allclose(out, ref, atol=1e-4, rtol=1e-4), f"max_err={max_err}"

    print("KERNEL_OK")
</pallas_src>

<mosaic_0001>
module attributes {stable_mosaic.version = 11 : i64} {
  func.func @mlp_kernel(%arg0: i32, %arg1: memref<64x300xf32, #tpu.memory_space<vmem>>, %arg2: memref<300x32xf32, #tpu.memory_space<vmem>>, %arg3: memref<1x32xf32, #tpu.memory_space<vmem>>, %arg4: memref<1x32xf32, #tpu.memory_space<vmem>>, %arg5: memref<1x1xf32, #tpu.memory_space<smem>>, %arg6: memref<1x1x64xf32, #tpu.memory_space<vmem>>) attributes {dimension_semantics = [#tpu.dimension_semantics<parallel>], iteration_bounds = array<i64: 4>, scalar_prefetch = 0 : i64, scratch_operands = 0 : i64, tpu.core_type = #tpu.core_type<tc>, window_params = [{transform_indices = @transform_0, window_bounds = array<i64: 64, 300>}, {pipeline_mode = #tpu.pipeline_mode<synchronous>, transform_indices = @transform_1, window_bounds = array<i64: 300, 32>}, {pipeline_mode = #tpu.pipeline_mode<synchronous>, transform_indices = @transform_2, window_bounds = array<i64: 1, 32>}, {pipeline_mode = #tpu.pipeline_mode<synchronous>, transform_indices = @transform_3, window_bounds = array<i64: 1, 32>}, {transform_indices = @transform_4, window_bounds = array<i64: 1, 1>}, {transform_indices = @transform_5, window_bounds = array<i64: 1, 1, 64>}]} {
    %c0 = arith.constant 0 : index
    %c0_0 = arith.constant 0 : index
    %0 = vector.load %arg1[%c0, %c0_0] : memref<64x300xf32, #tpu.memory_space<vmem>>, vector<64x300xf32>
    %c0_1 = arith.constant 0 : index
    %c0_2 = arith.constant 0 : index
    %1 = vector.load %arg2[%c0_1, %c0_2] : memref<300x32xf32, #tpu.memory_space<vmem>>, vector<300x32xf32>
    %cst = arith.constant dense<0.000000e+00> : vector<64x32xf32>
    %2 = tpu.matmul %0, %1, %cst {dimension_numbers = #tpu.dot_dimension_numbers<[1], [0], [0], [1], [0, 0, 1, 1], [], []>} : vector<64x300xf32>, vector<300x32xf32>, vector<64x32xf32> -> vector<64x32xf32>
    %c0_3 = arith.constant 0 : index
    %c0_4 = arith.constant 0 : index
    %3 = vector.load %arg3[%c0_3, %c0_4] : memref<1x32xf32, #tpu.memory_space<vmem>>, vector<1x32xf32>
    %4 = vector.broadcast %3 : vector<1x32xf32> to vector<64x32xf32>
    %5 = arith.addf %2, %4 : vector<64x32xf32>
    %cst_5 = arith.constant 0.000000e+00 : f32
    %6 = vector.broadcast %cst_5 : f32 to vector<64x32xf32>
    %7 = arith.maximumf %5, %6 : vector<64x32xf32>
    %c0_6 = arith.constant 0 : index
    %c0_7 = arith.constant 0 : index
    %8 = vector.load %arg4[%c0_6, %c0_7] : memref<1x32xf32, #tpu.memory_space<vmem>>, vector<1x32xf32>
    %cst_8 = arith.constant dense<0.000000e+00> : vector<1x64xf32>
    %9 = tpu.matmul %8, %7, %cst_8 {dimension_numbers = #tpu.dot_dimension_numbers<[1], [1], [0], [0], [0, 0, 1, 0], [], []>} : vector<1x32xf32>, vector<64x32xf32>, vector<1x64xf32> -> vector<1x64xf32>
    %c0_9 = arith.constant 0 : index
    %c0_10 = arith.constant 0 : index
    %10 = memref.load %arg5[%c0_9, %c0_10] : memref<1x1xf32, #tpu.memory_space<smem>>
    %11 = vector.broadcast %10 : f32 to vector<1x64xf32>
    %12 = arith.addf %9, %11 : vector<1x64xf32>
    %13 = arith.negf %12 : vector<1x64xf32>
    %14 = math.exp %13 : vector<1x64xf32>
    %cst_11 = arith.constant 1.000000e+00 : f32
    %15 = vector.broadcast %cst_11 : f32 to vector<1x64xf32>
    %16 = arith.addf %15, %14 : vector<1x64xf32>
    %17 = arith.divf %15, %16 : vector<1x64xf32>
    %c0_12 = arith.constant 0 : index
    %c0_13 = arith.constant 0 : index
    %c0_14 = arith.constant 0 : index
    %18 = vector.load %arg6[%c0_12, %c0_13, %c0_14] : memref<1x1x64xf32, #tpu.memory_space<vmem>>, vector<1x1x64xf32>
    %19 = vector.shape_cast %18 : vector<1x1x64xf32> to vector<1x64xf32>
    %20 = vector.shape_cast %17 : vector<1x64xf32> to vector<1x1x64xf32>
    tpu.vector_store %arg6[%c0_12, %c0_13, %c0_14], %20 {strides = array<i32>} : memref<1x1x64xf32, #tpu.memory_space<vmem>>, vector<1x1x64xf32>,
    return
  }
  func.func @transform_0(%arg0: i32) -> (i32, i32) {
    %c0_i32 = arith.constant 0 : i32
    %c0_i32_0 = arith.constant 0 : i32
    return %arg0, %c0_i32 : i32, i32
  }
  func.func @transform_1(%arg0: i32) -> (i32, i32) {
    %c0_i32 = arith.constant 0 : i32
    %c0_i32_0 = arith.constant 0 : i32
    %c0_i32_1 = arith.constant 0 : i32
    return %c0_i32, %c0_i32_0 : i32, i32
  }
  func.func @transform_2(%arg0: i32) -> (i32, i32) {
    %c0_i32 = arith.constant 0 : i32
    %c0_i32_0 = arith.constant 0 : i32
    %c0_i32_1 = arith.constant 0 : i32
    return %c0_i32, %c0_i32_0 : i32, i32
  }
  func.func @transform_3(%arg0: i32) -> (i32, i32) {
    %c0_i32 = arith.constant 0 : i32
    %c0_i32_0 = arith.constant 0 : i32
    %c0_i32_1 = arith.constant 0 : i32
    return %c0_i32, %c0_i32_0 : i32, i32
  }
  func.func @transform_4(%arg0: i32) -> (i32, i32) {
    %c0_i32 = arith.constant 0 : i32
    %c0_i32_0 = arith.constant 0 : i32
    %c0_i32_1 = arith.constant 0 : i32
    return %c0_i32, %c0_i32_0 : i32, i32
  }
  func.func @transform_5(%arg0: i32) -> (i32, i32, i32) {
    %c0_i32 = arith.constant 0 : i32
    %c0_i32_0 = arith.constant 0 : i32
    %c0_i32_1 = arith.constant 0 : i32
    return %arg0, %c0_i32, %c0_i32_0 : i32, i32, i32
  }
}

</mosaic_0001>

<llo_original>
// kernel: tpu_custom_call.1
$region0: #{tpu_custom_call.1}
  #allocation0 [shape = 'u32[]', space=smem, size = 0x4, offset = 0x4, fixed_abs, tag = 'smem constant byte address 0x4 - core index']
  #allocation1 [shape = 'u32[144,128]{1,0:T(1,128)}', space=vmem, size = 0x12000, scoped, tag = 'internal scratch']
  #allocation2 [shape = 'f32[1,1]{1,0:T(1,128)S(6)}', space=smem, size = 0x200, scoped, tag = 'scoped memory for tpu_custom_call.1']
  %s0 = inlined_call_operand.vmem [shape: f32[256,300], index: 0, kind: input, shape index: {}]
  %s1 = inlined_call_operand.vmem [shape: f32[300,32], index: 1, kind: input, shape index: {}]
  %s2 = inlined_call_operand.vmem [shape: f32[1,32], index: 2, kind: input, shape index: {}]
  %s3 = inlined_call_operand.vmem [shape: f32[1,32], index: 3, kind: input, shape index: {}]
  %s4 = inlined_call_operand.<no memory space> [shape: f32[1,1], index: 4, kind: input, shape index: {}]
  %s5 = inlined_call_operand.hbm [shape: f32[4,1,64], index: 5, kind: output, shape index: {}]
  %s6 = sld [smem:[#allocation0]]
  $region53: #{tpu_custom_call.1} parent=0
    _
  %s8 = ssub.s32 1, %s6
  %s9 = scalar_select 0, %s8, %s6
  %10 = sst [smem:[#allocation2]] %s4
  $region1: #{tpu_custom_call.1} parent=0
    #allocation3 [shape = 'u8[1024]{0}', space=vmem, size = 0x400, scoped, tag = 'output window, operand 0']
    #allocation4 [shape = 's32[2]{0}', space=sflag, size = 0x8, scoped, tag = 'scoped memory for tpu_custom_call.1']
    %11 = vsyncpa [#allocation4], 0
    %s12 = scalar_lea.sflag [#allocation4], 1
    %13 = vsyncpa %s12, 0
    loop: start=0, step=1, limit=6
    $region2: #{tpu_custom_call.1} parent=1 // loop_pre_header
      _
    $region3: #{tpu_custom_call.1} parent=1 // loop_header
      %s15 = sphi 0, %s19
      %p16 = scmp.ge.s32.totalorder %s15, 6
      %s25 = sphi 0, %s27
      %s28 = sphi 0, %s25
      %s29 = sphi 0, %s28
      %s45 = sphi 0, %s29
      %s49 = sphi 0, %s49
      %s51 = sphi 0, %s49
      %s52 = sphi 0, %s51
      %s66 = sphi 0, %s52
      %s70 = sphi 0, %s70
      %s72 = sphi 0, %s70
      %s73 = sphi 0, %s72
      %s87 = sphi 0, %s73
      %s91 = sphi 0, %s91
      %s93 = sphi 0, %s91
      %s94 = sphi 0, %s93
      %s108 = sphi 0, %s94
      %s112 = sphi 0, %s112
      %s114 = sphi 0, %s112
      %s115 = sphi 0, %s114
      %s129 = sphi 0, %s115
      %s135 = sphi 0, %s137
      %s138 = sphi 0, %s135
      %s139 = sphi 0, %s138
      %s155 = sphi 0, %s139
    $region4: #{tpu_custom_call.1} parent=1 // loop_header_branch
      %18 = sbr.rel (%p16) target = $region8
    $region5: #{tpu_custom_call.1} parent=1 // loop_body
      %s20 = ssub.s32 %s15, 1
      %s21 = ssub.s32 %s15, 2
      %s22 = sadd.s32 %s15, 1
      %s23 = ssub.s32 %s15, %s22
      %p24 = scmp.eq.s32.totalorder %s23, 0
      %s26 = sadd.s32 %s25, 1
      %s27 = scalar_select %p24, %s25, %s26
      %p30 = pneg %p24
      %p31 = scmp.eq.s32.totalorder %s15, 3
      %p32 = por %p30, %p31
      %p33 = scmp.ne.s32.totalorder %s25, %s28
      %p34 = scmp.eq.s32.totalorder %s15, 0
      %p35 = por %p33, %p34
      %p36 = scmp.ne.s32.totalorder %s25, %s28
      %p37 = scmp.eq.s32.totalorder %s20, 3
      %p38 = por %p36, %p37
      %p39 = scmp.ne.s32.totalorder %s28, %s29
      %p40 = scmp.eq.s32.totalorder %s20, 0
      %p41 = por %p39, %p40
      %p42 = scmp.ne.s32.totalorder %s28, %s29
      %p43 = scmp.eq.s32.totalorder %s21, 3
      %p44 = por %p42, %p43
      %p46 = scmp.ne.s32.totalorder %s29, %s45
      %p47 = scmp.eq.s32.totalorder %s21, 0
      %p48 = por %p46, %p47
      %s50 = sadd.s32 %s49, 1
      %p53 = scmp.eq.s32.totalorder %s15, 3
      %p54 = scmp.ne.s32.totalorder %s49, %s51
      %p55 = scmp.eq.s32.totalorder %s15, 0
      %p56 = por %p54, %p55
      %p57 = scmp.ne.s32.totalorder %s49, %s51
      %p58 = scmp.eq.s32.totalorder %s20, 3
      %p59 = por %p57, %p58
      %p60 = scmp.ne.s32.totalorder %s51, %s52
      %p61 = scmp.eq.s32.totalorder %s20, 0
      %p62 = por %p60, %p61
      %p63 = scmp.ne.s32.totalorder %s51, %s52
      %p64 = scmp.eq.s32.totalorder %s21, 3
      %p65 = por %p63, %p64
      %p67 = scmp.ne.s32.totalorder %s52, %s66
      %p68 = scmp.eq.s32.totalorder %s21, 0
      %p69 = por %p67, %p68
      %s71 = sadd.s32 %s70, 1
      %p74 = scmp.eq.s32.totalorder %s15, 3
      %p75 = scmp.ne.s32.totalorder %s70, %s72
      %p76 = scmp.eq.s32.totalorder %s15, 0
      %p77 = por %p75, %p76
      %p78 = scmp.ne.s32.totalorder %s70, %s72
      %p79 = scmp.eq.s32.totalorder %s20, 3
      %p80 = por %p78, %p79
      %p81 = scmp.ne.s32.totalorder %s72, %s73
      %p82 = scmp.eq.s32.totalorder %s20, 0
      %p83 = por %p81, %p82
      %p84 = scmp.ne.s32.totalorder %s72, %s73
      %p85 = scmp.eq.s32.totalorder %s21, 3
      %p86 = por %p84, %p85
      %p88 = scmp.ne.s32.totalorder %s73, %s87
      %p89 = scmp.eq.s32.totalorder %s21, 0
      %p90 = por %p88, %p89
      %s92 = sadd.s32 %s91, 1
      %p95 = scmp.eq.s32.totalorder %s15, 3
      %p96 = scmp.ne.s32.totalorder %s91, %s93
      %p97 = scmp.eq.s32.totalorder %s15, 0
      %p98 = por %p96, %p97
      %p99 = scmp.ne.s32.totalorder %s91, %s93
      %p100 = scmp.eq.s32.totalorder %s20, 3
      %p101 = por %p99, %p100
      %p102 = scmp.ne.s32.totalorder %s93, %s94
      %p103 = scmp.eq.s32.totalorder %s20, 0
      %p104 = por %p102, %p103
      %p105 = scmp.ne.s32.totalorder %s93, %s94
      %p106 = scmp.eq.s32.totalorder %s21, 3
      %p107 = por %p105, %p106
      %p109 = scmp.ne.s32.totalorder %s94, %s108
      %p110 = scmp.eq.s32.totalorder %s21, 0
      %p111 = por %p109, %p110
      %s113 = sadd.s32 %s112, 1
      %p116 = scmp.eq.s32.totalorder %s15, 3
      %p117 = scmp.ne.s32.totalorder %s112, %s114
      %p118 = scmp.eq.s32.totalorder %s15, 0
      %p119 = por %p117, %p118
      %p120 = scmp.ne.s32.totalorder %s112, %s114
      %p121 = scmp.eq.s32.totalorder %s20, 3
      %p122 = por %p120, %p121
      %p123 = scmp.ne.s32.totalorder %s114, %s115
      %p124 = scmp.eq.s32.totalorder %s20, 0
      %p125 = por %p123, %p124
      %p126 = scmp.ne.s32.totalorder %s114, %s115
      %p127 = scmp.eq.s32.totalorder %s21, 3
      %p128 = por %p126, %p127
      %p130 = scmp.ne.s32.totalorder %s115, %s129
      %p131 = scmp.eq.s32.totalorder %s21, 0
      %p132 = por %p130, %p131
      %s133 = ssub.s32 %s15, %s22
      %p134 = scmp.eq.s32.totalorder %s133, 0
      %s136 = sadd.s32 %s135, 1
      %s137 = scalar_select %p134, %s135, %s136
      %p140 = pneg %p134
      %p141 = scmp.eq.s32.totalorder %s15, 3
      %p142 = por %p140, %p141
      %p143 = scmp.ne.s32.totalorder %s135, %s138
      %p144 = scmp.eq.s32.totalorder %s15, 0
      %p145 = por %p143, %p144
      %p146 = scmp.ne.s32.totalorder %s135, %s138
      %p147 = scmp.eq.s32.totalorder %s20, 3
      %p148 = por %p146, %p147
      %p149 = scmp.ne.s32.totalorder %s138, %s139
      %p150 = scmp.eq.s32.totalorder %s20, 0
      %p151 = por %p149, %p150
      %p152 = scmp.ne.s32.totalorder %s138, %s139
      %p153 = scmp.eq.s32.totalorder %s21, 3
      %p154 = por %p152, %p153
      %p156 = scmp.ne.s32.totalorder %s139, %s155
      %p157 = scmp.eq.s32.totalorder %s21, 0
      %p158 = por %p156, %p157
      %p159 = scmp.le.s32.totalorder 1, %s15
      %p160 = scmp.lt.s32.totalorder %s15, 5
      %p161 = pnand %p159, %p160
      %p162 = pneg %p161
      // Predicated region
      $region9: #{tpu_custom_call.1} parent=5 // pred_check
        _
      $region10: #{tpu_custom_call.1} parent=5 // pred_check_branch
        %164 = sbr.rel (%p161) target = $region12
      $region11: #{tpu_custom_call.1} parent=5 // pred_region
        %s165 = ssub.s32 %s15, 1
        // Predicated region
        $region13: #{tpu_custom_call.1} parent=11 // pred_check
          %p166 = pneg %p62
        $region14: #{tpu_custom_call.1} parent=11 // pred_check_branch
          %168 = sbr.rel (%p166) target = $region16
        $region15: #{tpu_custom_call.1} parent=11 // pred_region
          _
        $region16: #{tpu_custom_call.1} parent=11 // pred_fallthru
          _
        // Predicated region
        $region17: #{tpu_custom_call.1} parent=11 // pred_check
          %p169 = pneg %p83
        $region18: #{tpu_custom_call.1} parent=11 // pred_check_branch
          %171 = sbr.rel (%p169) target = $region20
        $region19: #{tpu_custom_call.1} parent=11 // pred_region
          _
        $region20: #{tpu_custom_call.1} parent=11 // pred_fallthru
          _
        // Predicated region
        $region21: #{tpu_custom_call.1} parent=11 // pred_check
          %p172 = pneg %p104
        $region22: #{tpu_custom_call.1} parent=11 // pred_check_branch
          %174 = sbr.rel (%p172) target = $region24
        $region23: #{tpu_custom_call.1} parent=11 // pred_region
          _
        $region24: #{tpu_custom_call.1} parent=11 // pred_fallthru
          _
        // Predicated region
        $region25: #{tpu_custom_call.1} parent=11 // pred_check
          %p175 = pneg %p125
        $region26: #{tpu_custom_call.1} parent=11 // pred_check_branch
          %177 = sbr.rel (%p175) target = $region28
        $region27: #{tpu_custom_call.1} parent=11 // pred_region
          _
        $region28: #{tpu_custom_call.1} parent=11 // pred_fallthru
          _
      $region12: #{tpu_custom_call.1} parent=5 // pred_fallthru
        _
      %p178 = scmp.lt.s32.totalorder %s15, 4
      // Predicated region
      $region29: #{tpu_custom_call.1} parent=5 // pred_check
        %p179 = pneg %p178
      $region30: #{tpu_custom_call.1} parent=5 // pred_check_branch
        %181 = sbr.rel (%p179) target = $region32
      $region31: #{tpu_custom_call.1} parent=5 // pred_region
        // Predicated region
        $region33: #{tpu_custom_call.1} parent=31 // pred_check
          %p182 = pneg %p35
        $region34: #{tpu_custom_call.1} parent=31 // pred_check_branch
          %184 = sbr.rel (%p182) target = $region36
        $region35: #{tpu_custom_call.1} parent=31 // pred_region
          %s185 = smul.u32 8, %s15
          %p186 = scmp.lt.s32.totalorder %s185, 31
          %s187 = scalar_select %p186, %s185, 31
          %s188 = smul.addr %s187, 3
          %s189 = smul.addr %s188, 8
          %s190 = scalar_lea.vmem %s0, %s189
          %s191 = smul.u32 8, %s15
        $region36: #{tpu_custom_call.1} parent=31 // pred_fallthru
          _
      $region32: #{tpu_custom_call.1} parent=5 // pred_fallthru
        _
      %p192 = scmp.le.s32.totalorder 1, %s15
      %p193 = scmp.lt.s32.totalorder %s15, 5
      %p194 = pnand %p192, %p193
      %p195 = pneg %p194
      // Predicated region
      $region37: #{tpu_custom_call.1} parent=5 // pred_check
        _
      $region38: #{tpu_custom_call.1} parent=5 // pred_check_branch
        %197 = sbr.rel (%p194) target = $region40
      $region39: #{tpu_custom_call.1} parent=5 // pred_region
        %s198 = ssub.s32 %s15, 1
        %s199 = smul.u32 8, %s20
        %p200 = scmp.lt.s32.totalorder %s199, 31
        %s201 = scalar_select %p200, %s199, 31
        %s202 = smul.addr %s201, 3
        %s203 = smul.addr %s202, 8
        %s204 = scalar_lea.vmem %s0, %s203
        %p205 = pneg %p41
        %p206 = pneg %p38
        %p207 = pneg %p62
        %p208 = pneg %p59
        %p209 = pneg %p83
        %p210 = pneg %p80
        %p211 = pneg %p104
        %p212 = pneg %p101
        %p213 = pneg %p125
        %p214 = pneg %p122
        %p215 = pneg %p151
        %p216 = pneg %p148
        %s217 = sand.u32 %s138, 1
        %s218 = scalar_lea.sflag [#allocation4], %s217
        %s219 = sand.u32 %s138, 1
        %s220 = scalar_lea.vmem [#allocation3], %s219
        %s221 = smul.u32 8, %s20
        %p222 = scmp.lt.s32.totalorder %s221, 31
        %s223 = scalar_select %p222, %s221, 31
        %s224 = smul.addr %s223, 3
        %s225 = smul.addr %s224, 8
        %s226 = scalar_lea.vmem %s0, %s225
        %s227 = smul.u32 8, %s20
        %v228 = vld [vmem:[%s226] sm:$0xff]
        %v229 = vld [vmem:[%s226 + $0x8] sm:$0xff]
        %v230 = vld [vmem:[%s226 + $0x10] sm:$0xff]
        %v231 = vld [vmem:[%s226 + $0x18] sm:$0xff]
        %v232 = vld [vmem:[%s226 + $0x20] sm:$0xff]
        %v233 = vld [vmem:[%s226 + $0x28] sm:$0xff]
        %v234 = vld [vmem:[%s226 + $0x30] sm:$0xff]
        %v235 = vld [vmem:[%s226 + $0x38] sm:$0xff]
        %v236 = vld [vmem:[%s226 + $0x40] sm:$0xff]
        %v237 = vld [vmem:[%s226 + $0x48] sm:$0xff]
        %v238 = vld [vmem:[%s226 + $0x50] sm:$0xff]
        %v239 = vld [vmem:[%s226 + $0x58] sm:$0xff]
        %v240 = vld [vmem:[%s226 + $0x60] sm:$0xff]
        %v241 = vld [vmem:[%s226 + $0x68] sm:$0xff]
        %v242 = vld [vmem:[%s226 + $0x70] sm:$0xff]
        %v243 = vld [vmem:[%s226 + $0x78] sm:$0xff]
        %v244 = vld [vmem:[%s226 + $0x80] sm:$0xff]
        %v245 = vld [vmem:[%s226 + $0x88] sm:$0xff]
        %v246 = vld [vmem:[%s226 + $0x90] sm:$0xff]
        %v247 = vld [vmem:[%s226 + $0x98] sm:$0xff]
        %v248 = vld [vmem:[%s226 + $0xa0] sm:$0xff]
        %v249 = vld [vmem:[%s226 + $0xa8] sm:$0xff]
        %v250 = vld [vmem:[%s226 + $0xb0] sm:$0xff]
        %v251 = vld [vmem:[%s226 + $0xb8] sm:$0xff]
        %v252 = vld [vmem:[%s1] sm:$0xff]
        %v253 = vld [vmem:[%s1 + $0x8] sm:$0xff]
        %v254 = vld [vmem:[%s1 + $0x10] sm:$0xff]
        %v255 = vld [vmem:[%s1 + $0x18] sm:$0xff]
        %v256 = vld [vmem:[%s1 + $0x20] sm:$0xff]
        %v257 = vld [vmem:[%s1 + $0x28] sm:$0xff]
        %v258 = vld [vmem:[%s1 + $0x30] sm:$0xff]
        %v259 = vld [vmem:[%s1 + $0x38] sm:$0xff]
        %v260 = vld [vmem:[%s1 + $0x40] sm:$0xff]
        %v261 = vld [vmem:[%s1 + $0x48] sm:$0xff]
        %v262 = vld [vmem:[%s1 + $0x50] sm:$0xff]
        %v263 = vld [vmem:[%s1 + $0x58] sm:$0xff]
        %v264 = vld [vmem:[%s1 + $0x60] sm:$0xff]
        %v265 = vld [vmem:[%s1 + $0x68] sm:$0xff]
        %v266 = vld [vmem:[%s1 + $0x70] sm:$0xff]
        %v267 = vld [vmem:[%s1 + $0x78] sm:$0xff]
        %v268 = vld [vmem:[%s1 + $0x80] sm:$0xff]
        %v269 = vld [vmem:[%s1 + $0x88] sm:$0xff]
        %v270 = vld [vmem:[%s1 + $0x90] sm:$0xff]
        %v271 = vld [vmem:[%s1 + $0x98] sm:$0xff]
        %v272 = vld [vmem:[%s1 + $0xa0] sm:$0xff]
        %v273 = vld [vmem:[%s1 + $0xa8] sm:$0xff]
        %v274 = vld [vmem:[%s1 + $0xb0] sm:$0xff]
        %v275 = vld [vmem:[%s1 + $0xb8] sm:$0xff]
        %v276 = vld [vmem:[%s1 + $0xc0] sm:$0xff]
        %v277 = vld [vmem:[%s1 + $0xc8] sm:$0xff]
        %v278 = vld [vmem:[%s1 + $0xd0] sm:$0xff]
        %v279 = vld [vmem:[%s1 + $0xd8] sm:$0xff]
        %v280 = vld [vmem:[%s1 + $0xe0] sm:$0xff]
        %v281 = vld [vmem:[%s1 + $0xe8] sm:$0xff]
        %v282 = vld [vmem:[%s1 + $0xf0] sm:$0xff]
        %v283 = vld [vmem:[%s1 + $0xf8] sm:$0xff]
        %v284 = vld [vmem:[%s1 + $0x100] sm:$0xff]
        %v285 = vld [vmem:[%s1 + $0x108] sm:$0xff]
        %v286 = vld [vmem:[%s1 + $0x110] sm:$0xff]
        %v287 = vld [vmem:[%s1 + $0x118] sm:$0xff]
        %v288 = vld [vmem:[%s1 + $0x120] sm:$0xff]
        %v289 = vld [vmem:[%s1 + $0x128] sm:$0xf]
        %v290 = vld [vmem:[%s2] sm:$0x1]
        %v292 = vlaneseq
        %v293 = vshrl.u32 %v292, 7
        %v294 = vsub.s32 0, %v293
        %v295 = vrot.slane %v290, %v294
        %vm297 = vcmask 359424
        %v299 = vsel %vm297, %v230, 0
        %v302 = vsel %vm297, %v233, 0
        %v305 = vsel %vm297, %v236, 0
        %v308 = vsel %vm297, %v239, 0
        %v311 = vsel %vm297, %v242, 0
        %v314 = vsel %vm297, %v245, 0
        %v317 = vsel %vm297, %v248, 0
        %v320 = vsel %vm297, %v251, 0
        %vm322 = vcmask 1043456
        %v324 = vsel %vm322, %v289, 0
        %326 = vmatprep.subr.mxu0 0.0
        %327 = vmatpush1.msra.mxu0 %v267
        %328 = vmatprep.subr.mxu0 0.0
        %329 = vmatpush1.msra.mxu0 %v266
        %330 = vmatprep.subr.mxu0 0.0
        %331 = vmatpush1.msra.mxu0 %v265
        %332 = vmatprep.subr.mxu0 0.0
        %333 = vmatpush1.msra.mxu0 %v264
        %334 = vmatprep.subr.mxu0 0.0
        %335 = vmatpush1.msra.mxu0 %v263
        %336 = vmatprep.subr.mxu0 0.0
        %337 = vmatpush1.msra.mxu0 %v262
        %338 = vmatprep.subr.mxu0 0.0
        %339 = vmatpush1.msra.mxu0 %v261
        %340 = vmatprep.subr.mxu0 0.0
        %341 = vmatpush1.msra.mxu0 %v260
        %342 = vmatprep.subr.mxu0 0.0
        %343 = vmatpush1.msra.mxu0 %v259
        %344 = vmatprep.subr.mxu0 0.0
        %345 = vmatpush1.msra.mxu0 %v258
        %346 = vmatprep.subr.mxu0 0.0
        %347 = vmatpush1.msra.mxu0 %v257
        %348 = vmatprep.subr.mxu0 0.0
        %349 = vmatpush1.msra.mxu0 %v256
        %350 = vmatprep.subr.mxu0 0.0
        %351 = vmatpush1.msra.mxu0 %v255
        %352 = vmatprep.subr.mxu0 0.0
        %353 = vmatpush1.msra.mxu0 %v254
        %354 = vmatprep.subr.mxu0 0.0
        %355 = vmatpush1.msra.mxu0 %v253
        %356 = vmatprep.subr.mxu0 0.0
        %357 = vmatpush1.msra.mxu0 %v252
        %358 = vmatprep.subr.mxu0 0.0
        %359 = vmatpush2.msra.mxu0 %v283
        %360 = vmatprep.subr.mxu0 0.0
        %361 = vmatpush2.msra.mxu0 %v282
        %362 = vmatprep.subr.mxu0 0.0
        %363 = vmatpush2.msra.mxu0 %v281
        %364 = vmatprep.subr.mxu0 0.0
        %365 = vmatpush2.msra.mxu0 %v280
        %366 = vmatprep.subr.mxu0 0.0
        %367 = vmatpush2.msra.mxu0 %v279
        %368 = vmatprep.subr.mxu0 0.0
        %369 = vmatpush2.msra.mxu0 %v278
        %370 = vmatprep.subr.mxu0 0.0
        %371 = vmatpush2.msra.mxu0 %v277
        %372 = vmatprep.subr.mxu0 0.0
        %373 = vmatpush2.msra.mxu0 %v276
        %374 = vmatprep.subr.mxu0 0.0
        %375 = vmatpush2.msra.mxu0 %v275
        %376 = vmatprep.subr.mxu0 0.0
        %377 = vmatpush2.msra.mxu0 %v274
        %378 = vmatprep.subr.mxu0 0.0
        %379 = vmatpush2.msra.mxu0 %v273
        %380 = vmatprep.subr.mxu0 0.0
        %381 = vmatpush2.msra.mxu0 %v272
        %382 = vmatprep.subr.mxu0 0.0
        %383 = vmatpush2.msra.mxu0 %v271
        %384 = vmatprep.subr.mxu0 0.0
        %385 = vmatpush2.msra.mxu0 %v270
        %386 = vmatprep.subr.mxu0 0.0
        %387 = vmatpush2.msra.mxu0 %v269
        %388 = vmatprep.subr.mxu0 0.0
        %389 = vmatpush2.msra.mxu0 %v268
        %390 = vmatprep.mubr.f32.mxu0 %v229
        %391 = vmatmul.mubr.f32.gmra.mxu0 %v228
        %v392 = vpop.f32.mrf.mxu0
        %v393 = vadd.f32 %v295, %v392
        %v394 = vpop.f32.mrf.mxu0
        %395 = vmatprep.mubr.f32.mxu0 %v232
        %396 = vmatmul.mubr.f32.gmra.mxu0 %v231
        %v397 = vpop.f32.mrf.mxu0
        %v398 = vadd.f32 %v295, %v397
        %v399 = vpop.f32.mrf.mxu0
        %400 = vmatprep.mubr.f32.mxu0 %v235
        %401 = vmatmul.mubr.f32.gmra.mxu0 %v234
        %v402 = vpop.f32.mrf.mxu0
        %v403 = vadd.f32 %v295, %v402
        %v404 = vpop.f32.mrf.mxu0
        %405 = vmatprep.mubr.f32.mxu0 %v238
        %406 = vmatmul.mubr.f32.gmra.mxu0 %v237
        %v407 = vpop.f32.mrf.mxu0
        %v408 = vadd.f32 %v295, %v407
        %v409 = vpop.f32.mrf.mxu0
        %410 = vmatprep.mubr.f32.mxu0 %v241
        %411 = vmatmul.mubr.f32.gmra.mxu0 %v240
        %v412 = vpop.f32.mrf.mxu0
        %v413 = vadd.f32 %v295, %v412
        %v414 = vpop.f32.mrf.mxu0
        %415 = vmatprep.mubr.f32.mxu0 %v244
        %416 = vmatmul.mubr.f32.gmra.mxu0 %v243
        %v417 = vpop.f32.mrf.mxu0
        %v418 = vadd.f32 %v295, %v417
        %v419 = vpop.f32.mrf.mxu0
        %420 = vmatprep.mubr.f32.mxu0 %v247
        %421 = vmatmul.mubr.f32.gmra.mxu0 %v246
        %v422 = vpop.f32.mrf.mxu0
        %v423 = vadd.f32 %v295, %v422
        %v424 = vpop.f32.mrf.mxu0
        %425 = vmatprep.mubr.f32.mxu0 %v250
        %426 = vmatmul.mubr.f32.gmra.mxu0 %v249
        %v427 = vpop.f32.mrf.mxu0
        %v428 = vadd.f32 %v295, %v427
        %v429 = vpop.f32.mrf.mxu0
        %430 = vdwg.mxu0
        %431 = vmatprep.subr.mxu0 0.0
        %432 = vmatpush1.msra.mxu0 0.0
        %433 = vmatprep.subr.mxu0 0.0
        %434 = vmatpush1.msra.mxu0 0.0
        %435 = vmatprep.subr.mxu0 0.0
        %436 = vmatpush1.msra.mxu0 0.0
        %437 = vmatprep.subr.mxu0 0.0
        %438 = vmatpush1.msra.mxu0 0.0
        %439 = vmatprep.subr.mxu0 0.0
        %440 = vmatpush1.msra.mxu0 0.0
        %441 = vmatprep.subr.mxu0 0.0
        %442 = vmatpush1.msra.mxu0 0.0
        %443 = vmatprep.subr.mxu0 0.0
        %444 = vmatpush1.msra.mxu0 0.0
        %445 = vmatprep.subr.mxu0 0.0
        %446 = vmatpush1.msra.mxu0 0.0
        %447 = vmatprep.subr.mxu0 0.0
        %448 = vmatpush1.msra.mxu0 0.0
        %449 = vmatprep.subr.mxu0 0.0
        %450 = vmatpush1.msra.mxu0 0.0
        %451 = vmatprep.subr.mxu0 0.0
        %452 = vmatpush1.msra.mxu0 %v324
        %453 = vmatprep.subr.mxu0 0.0
        %454 = vmatpush1.msra.mxu0 %v288
        %455 = vmatprep.subr.mxu0 0.0
        %456 = vmatpush1.msra.mxu0 %v287
        %457 = vmatprep.subr.mxu0 0.0
        %458 = vmatpush1.msra.mxu0 %v286
        %459 = vmatprep.subr.mxu0 0.0
        %460 = vmatpush1.msra.mxu0 %v285
        %461 = vmatprep.subr.mxu0 0.0
        %462 = vmatpush1.msra.mxu0 %v284
        %463 = vmatprep.subr.mxu0 0.0
        %464 = vmatpush2.msra.mxu0 0.0
        %465 = vmatprep.subr.mxu0 0.0
        %466 = vmatpush2.msra.mxu0 0.0
        %467 = vmatprep.subr.mxu0 0.0
        %468 = vmatpush2.msra.mxu0 0.0
        %469 = vmatprep.subr.mxu0 0.0
        %470 = vmatpush2.msra.mxu0 0.0
        %471 = vmatprep.subr.mxu0 0.0
        %472 = vmatpush2.msra.mxu0 0.0
        %473 = vmatprep.subr.mxu0 0.0
        %474 = vmatpush2.msra.mxu0 0.0
        %475 = vmatprep.subr.mxu0 0.0
        %476 = vmatpush2.msra.mxu0 0.0
        %477 = vmatprep.subr.mxu0 0.0
        %478 = vmatpush2.msra.mxu0 0.0
        %479 = vmatprep.subr.mxu0 0.0
        %480 = vmatpush2.msra.mxu0 0.0
        %481 = vmatprep.subr.mxu0 0.0
        %482 = vmatpush2.msra.mxu0 0.0
        %483 = vmatprep.subr.mxu0 0.0
        %484 = vmatpush2.msra.mxu0 0.0
        %485 = vmatprep.subr.mxu0 0.0
        %486 = vmatpush2.msra.mxu0 0.0
        %487 = vmatprep.subr.mxu0 0.0
        %488 = vmatpush2.msra.mxu0 0.0
        %489 = vmatprep.subr.mxu0 0.0
        %490 = vmatpush2.msra.mxu0 0.0
        %491 = vmatprep.subr.mxu0 0.0
        %492 = vmatpush2.msra.mxu0 0.0
        %493 = vmatprep.subr.mxu0 0.0
        %494 = vmatpush2.msra.mxu0 0.0
        %495 = vmatprep.mubr.f32.mxu0 0.0
        %496 = vmatmul.mubr.f32.gmra.mxu0 %v299
        %v497 = vpop.f32.mrf.mxu0
        %v498 = vadd.f32 %v393, %v497
        %v499 = vpop.f32.mrf.mxu0
        %500 = vmatprep.mubr.f32.mxu0 0.0
        %501 = vmatmul.mubr.f32.gmra.mxu0 %v302
        %v502 = vpop.f32.mrf.mxu0
        %v503 = vadd.f32 %v398, %v502
        %v504 = vpop.f32.mrf.mxu0
        %505 = vmatprep.mubr.f32.mxu0 0.0
        %506 = vmatmul.mubr.f32.gmra.mxu0 %v305
        %v507 = vpop.f32.mrf.mxu0
        %v508 = vadd.f32 %v403, %v507
        %v509 = vpop.f32.mrf.mxu0
        %510 = vmatprep.mubr.f32.mxu0 0.0
        %511 = vmatmul.mubr.f32.gmra.mxu0 %v308
        %v512 = vpop.f32.mrf.mxu0
        %v513 = vadd.f32 %v408, %v512
        %v514 = vpop.f32.mrf.mxu0
        %515 = vmatprep.mubr.f32.mxu0 0.0
        %516 = vmatmul.mubr.f32.gmra.mxu0 %v311
        %v517 = vpop.f32.mrf.mxu0
        %v518 = vadd.f32 %v413, %v517
        %v519 = vpop.f32.mrf.mxu0
        %520 = vmatprep.mubr.f32.mxu0 0.0
        %521 = vmatmul.mubr.f32.gmra.mxu0 %v314
        %v522 = vpop.f32.mrf.mxu0
        %v523 = vadd.f32 %v418, %v522
        %v524 = vpop.f32.mrf.mxu0
        %525 = vmatprep.mubr.f32.mxu0 0.0
        %526 = vmatmul.mubr.f32.gmra.mxu0 %v317
        %v527 = vpop.f32.mrf.mxu0
        %v528 = vadd.f32 %v423, %v527
        %v529 = vpop.f32.mrf.mxu0
        %530 = vmatprep.mubr.f32.mxu0 0.0
        %531 = vmatmul.mubr.f32.gmra.mxu0 %v320
        %v532 = vpop.f32.mrf.mxu0
        %v533 = vadd.f32 %v428, %v532
        %v534 = vpop.f32.mrf.mxu0
        %535 = vdwg.mxu0
        %v536 = vmax.f32 %v498, 0.0
        %v537 = vmax.f32 %v503, 0.0
        %v538 = vmax.f32 %v508, 0.0
        %v539 = vmax.f32 %v513, 0.0
        %v540 = vmax.f32 %v518, 0.0
        %v541 = vmax.f32 %v523, 0.0
        %v542 = vmax.f32 %v528, 0.0
        %v543 = vmax.f32 %v533, 0.0
        %v544 = vld [vmem:[%s3] sm:$0x1]
        %s545 = sld [smem:[#allocation2]]
        %v546 = vstv %s545
        %vm547 = vcmask 261120
        %v549 = vsel %vm547, %v544, 0
        %v552 = vsel %vm547, %v536, 0
        %v555 = vsel %vm547, %v537, 0
        %v558 = vsel %vm547, %v538, 0
        %v561 = vsel %vm547, %v539, 0
        %v564 = vsel %vm547, %v540, 0
        %v567 = vsel %vm547, %v541, 0
        %v570 = vsel %vm547, %v542, 0
        %v573 = vsel %vm547, %v543, 0
        %575 = vmatprep.subr.mxu0 0.0
        %576 = vmatpush1.xpose.msra.mxu0 0.0
        %577 = vmatprep.subr.mxu0 0.0
        %578 = vmatpush1.xpose.msra.mxu0 0.0
        %579 = vmatprep.subr.mxu0 0.0
        %580 = vmatpush1.xpose.msra.mxu0 0.0
        %581 = vmatprep.subr.mxu0 0.0
        %582 = vmatpush1.xpose.msra.mxu0 0.0
        %583 = vmatprep.subr.mxu0 0.0
        %584 = vmatpush1.xpose.msra.mxu0 0.0
        %585 = vmatprep.subr.mxu0 0.0
        %586 = vmatpush1.xpose.msra.mxu0 0.0
        %587 = vmatprep.subr.mxu0 0.0
        %588 = vmatpush1.xpose.msra.mxu0 0.0
        %589 = vmatprep.subr.mxu0 0.0
        %590 = vmatpush1.xpose.msra.mxu0 0.0
        %591 = vmatprep.subr.mxu0 0.0
        %592 = vmatpush1.xpose.msra.mxu0 %v573
        %593 = vmatprep.subr.mxu0 0.0
        %594 = vmatpush1.xpose.msra.mxu0 %v570
        %595 = vmatprep.subr.mxu0 0.0
        %596 = vmatpush1.xpose.msra.mxu0 %v567
        %597 = vmatprep.subr.mxu0 0.0
        %598 = vmatpush1.xpose.msra.mxu0 %v564
        %599 = vmatprep.subr.mxu0 0.0
        %600 = vmatpush1.xpose.msra.mxu0 %v561
        %601 = vmatprep.subr.mxu0 0.0
        %602 = vmatpush1.xpose.msra.mxu0 %v558
        %603 = vmatprep.subr.mxu0 0.0
        %604 = vmatpush1.xpose.msra.mxu0 %v555
        %605 = vmatprep.subr.mxu0 0.0
        %606 = vmatpush1.xpose.msra.mxu0 %v552
        %607 = vmatprep.subr.mxu0 0.0
        %608 = vmatpush2.xpose.msra.mxu0 0.0
        %609 = vmatprep.subr.mxu0 0.0
        %610 = vmatpush2.xpose.msra.mxu0 0.0
        %611 = vmatprep.subr.mxu0 0.0
        %612 = vmatpush2.xpose.msra.mxu0 0.0
        %613 = vmatprep.subr.mxu0 0.0
        %614 = vmatpush2.xpose.msra.mxu0 0.0
        %615 = vmatprep.subr.mxu0 0.0
        %616 = vmatpush2.xpose.msra.mxu0 0.0
        %617 = vmatprep.subr.mxu0 0.0
        %618 = vmatpush2.xpose.msra.mxu0 0.0
        %619 = vmatprep.subr.mxu0 0.0
        %620 = vmatpush2.xpose.msra.mxu0 0.0
        %621 = vmatprep.subr.mxu0 0.0
        %622 = vmatpush2.xpose.msra.mxu0 0.0
        %623 = vmatprep.subr.mxu0 0.0
        %624 = vmatpush2.xpose.msra.mxu0 0.0
        %625 = vmatprep.subr.mxu0 0.0
        %626 = vmatpush2.xpose.msra.mxu0 0.0
        %627 = vmatprep.subr.mxu0 0.0
        %628 = vmatpush2.xpose.msra.mxu0 0.0
        %629 = vmatprep.subr.mxu0 0.0
        %630 = vmatpush2.xpose.msra.mxu0 0.0
        %631 = vmatprep.subr.mxu0 0.0
        %632 = vmatpush2.xpose.msra.mxu0 0.0
        %633 = vmatprep.subr.mxu0 0.0
        %634 = vmatpush2.xpose.msra.mxu0 0.0
        %635 = vmatprep.subr.mxu0 0.0
        %636 = vmatpush2.xpose.msra.mxu0 0.0
        %637 = vmatprep.subr.mxu0 0.0
        %638 = vmatpush2.xpose.msra.mxu0 0.0
        %639 = vmatprep.mubr.f32.mxu0 0.0
        %640 = vmatmul.mubr.f32.gmra.mxu0 %v549
        %v641 = vpop.f32.mrf.mxu0
        %v642 = vadd.f32 %v546, %v641
        %v643 = vpop.f32.mrf.mxu0
        %644 = vdwg.mxu0
        %v645 = vxor.u32 %v642, 2147483648
        %v646 = vmul.f32 %v645, 1.442695
        %v647 = vpow.pop %v646
        %v648 = vadd.f32 %v647, 1.0
        %v649 = vrcp.pop %v648
        %v650 = vmul.f32 1.0, %v649
        %vm651 = vcmask 516096
        %652 = vst.msk [vmem:[%s220] sm:$0x1] %vm651, %v650
        %s653 = sand.u32 %s138, 1
        %s654 = scalar_lea.sflag [#allocation4], %s653
        %s655 = sand.u32 %s138, 1
        %s656 = scalar_lea.vmem [#allocation3], %s655
        // Predicated region
        $region41: #{tpu_custom_call.1} parent=39 // pred_check
          %p657 = pneg %p148
        $region42: #{tpu_custom_call.1} parent=39 // pred_check_branch
          %659 = sbr.rel (%p657) target = $region44
        $region43: #{tpu_custom_call.1} parent=39 // pred_region
          %s661 = ssub.s32 16, 16
          %662 = vsyncadd %s654, %s661
          %s663 = smul.addr %s20, 16
          %s664 = scalar_lea.hbm %s5, %s663
          %s666 = sshll.u32 %s656, 4
          %s667 = int_to_ptr.vmem [resolvable:$true] %s666
          %669 = dma.vmem_to_hbm [thread:$0]  %s667, 16, %s664, %s654
        $region44: #{tpu_custom_call.1} parent=39 // pred_fallthru
          _
      $region40: #{tpu_custom_call.1} parent=5 // pred_fallthru
        _
      %p670 = scmp.le.s32.totalorder 2, %s15
      // Predicated region
      $region45: #{tpu_custom_call.1} parent=5 // pred_check
        %p671 = pneg %p670
      $region46: #{tpu_custom_call.1} parent=5 // pred_check_branch
        %673 = sbr.rel (%p671) target = $region48
      $region47: #{tpu_custom_call.1} parent=5 // pred_region
        %s674 = ssub.s32 %s15, 2
        // Predicated region
        $region49: #{tpu_custom_call.1} parent=47 // pred_check
          %p675 = pneg %p154
        $region50: #{tpu_custom_call.1} parent=47 // pred_check_branch
          %677 = sbr.rel (%p675) target = $region52
        $region51: #{tpu_custom_call.1} parent=47 // pred_region
          %s678 = sand.u32 %s139, 1
          %s679 = scalar_lea.sflag [#allocation4], %s678
          %s680 = sand.u32 %s139, 1
          %s681 = scalar_lea.vmem [#allocation3], %s680
          %682 = dma.done %s679, 16
        $region52: #{tpu_custom_call.1} parent=47 // pred_fallthru
          _
      $region48: #{tpu_custom_call.1} parent=5 // pred_fallthru
        _
    $region6: #{tpu_custom_call.1} parent=1 // loop_footer
      %s19 = sadd.s32 1, %s15
    $region7: #{tpu_custom_call.1} parent=1 // loop_footer_branch
      %14 = sbr.rel target = $region3
    $region8: #{tpu_custom_call.1} parent=1 // loop_exit
      _
    %683 = vsyncpa [#allocation4], 1
    %s684 = scalar_lea.sflag [#allocation4], 1
    %685 = vsyncpa %s684, 1

</llo_original>
